<compile_context>
chip_gen: v6e
topology: v6e:2x2x1
jax: 0.10.0
libtpu: 0.0.40
codegen_flags: <defaults>
</compile_context>

<pallas_src>
import functools

import jax
import jax.numpy as jnp
from jax.experimental import pallas as pl
from jax.experimental.pallas import tpu as pltpu


_LANE = 128          # lane (last-dim) tiling unit
_BF16_SUBLANE = 16   # bf16 minimum sublane tile (packed pairs)
_NEG_INF = -1e30


def _round_up(n, m):
    return ((n + m - 1) // m) * m


def _vmem_capacity_bytes():
    """Best-effort VMEM capacity query; conservative v7x fallback (64 MiB)."""
    try:
        info = pltpu.get_tpu_info()
        cap = int(getattr(info, "vmem_capacity_bytes", 0) or 0)
        if cap > 0:
            return cap
    except Exception:
        pass
    return 64 * 2**20


def _make_mlp_kernel(n_layers):
    """Fused (Linear->ReLU)* -> Linear -> softmax for one batch tile, in VMEM.

    Refs: (x, w0, b0, ..., w_{L-1}, b_{L-1}, out).  Matmuls run in bf16 on the
    MXU with f32 accumulation; bias add, ReLU and the softmax stay f32.  Padded
    output lanes carry a -1e30 bias, so they vanish under the softmax without
    any in-kernel masking.
    """

    def kernel(*refs):
        x_ref = refs[0]
        o_ref = refs[-1]
        wb = refs[1:-1]

        h = x_ref[...]                                    # bf16 [tb, d_in_p]
        z = None
        for i in range(n_layers):
            w_ref, b_ref = wb[2 * i], wb[2 * i + 1]
            z = jnp.dot(h, w_ref[...], preferred_element_type=jnp.float32)
            z = z + b_ref[...]                            # f32
            if i < n_layers - 1:
                h = jnp.maximum(z, 0.0).astype(jnp.bfloat16)

        # Softmax over the feature axis (PyTorch dim=1).  Exact division so
        # rows sum to 1 to f32 precision.
        z = z - jnp.max(z, axis=1, keepdims=True)
        e = jnp.exp(z)
        o_ref[...] = (e / jnp.sum(e, axis=1, keepdims=True)).astype(o_ref.dtype)

    return kernel


def prepare_params(params):
    """Pad & cast the weights ONCE (outside the per-call hot path).

    Returns (flat, dims_p, outputs):
      flat   = (w0_p, b0_p, ..., w_{L-1}_p, b_{L-1}_p)
      w_p    : bf16, zero-padded to lane-dense [in_p, out_p] (multiples of 128)
      b_p    : f32 [1, out_p]; the LAST layer's padded lanes are -1e30 so the
               in-kernel softmax ignores them with no extra masking.
    """
    n_layers = len(params)
    dims = [params[0][0].shape[0]] + [w.shape[1] for (w, _) in params]
    dims_p = tuple(_round_up(d, _LANE) for d in dims)
    outputs = params[-1][0].shape[1]

    flat = []
    for i, (w, b) in enumerate(params):
        w_p = jnp.zeros((dims_p[i], dims_p[i + 1]), jnp.bfloat16)
        w_p = w_p.at[: w.shape[0], : w.shape[1]].set(w.astype(jnp.bfloat16))
        fill = _NEG_INF if i == n_layers - 1 else 0.0
        b_p = jnp.full((1, dims_p[i + 1]), fill, jnp.float32)
        b_p = b_p.at[:, : b.shape[1]].set(b.astype(jnp.float32))
        flat += [w_p, b_p]
    return tuple(flat), dims_p, outputs


def _choose_tb(batch, per_row_bytes, fixed_bytes, budget_bytes, max_tb):
    """Largest multiple-of-16 batch tile fitting the VMEM budget, with a
    batch-padding-waste guard.  No forced grid splitting for tiny batches."""
    b16 = _round_up(batch, _BF16_SUBLANE)
    tb = min(max_tb, b16)
    while tb > _BF16_SUBLANE and fixed_bytes + tb * per_row_bytes > budget_bytes:
        tb = max(_BF16_SUBLANE, _round_up(tb // 2, _BF16_SUBLANE))
    # Avoid >25% batch-padding waste at awkward sizes (e.g. B=520, tb=512).
    while tb > _BF16_SUBLANE and (_round_up(batch, tb) - b16) * 4 > b16:
        tb = max(_BF16_SUBLANE, _round_up(tb // 2, _BF16_SUBLANE))
    return tb


@functools.partial(
    jax.jit, static_argnames=("dims_p", "outputs", "tb", "vmem_limit"))
def _mlp_forward_impl(x, flat, *, dims_p, outputs, tb, vmem_limit):
    B, inputs = x.shape
    n_layers = len(flat) // 2
    B_pad = _round_up(B, tb)
    grid = (B_pad // tb,)

    # Activation padding/cast (per-call; weights were padded in prepare_params).
    x_p = jnp.zeros((B_pad, dims_p[0]), jnp.bfloat16)
    x_p = x_p.at[:B, :inputs].set(x.astype(jnp.bfloat16))

    def batch_map(i):
        return (i, 0)

    def full_map(i):
        return (0, 0)

    # Grid-invariant weights/biases: single-buffered (nothing to prefetch).
    const_specs = [
        pl.BlockSpec(a.shape, full_map, pipeline_mode=pl.Buffered(1))
        for a in flat
    ]
    in_specs = [pl.BlockSpec((tb, dims_p[0]), batch_map)] + const_specs
    out_spec = pl.BlockSpec((tb, dims_p[-1]), batch_map)

    out_p = pl.pallas_call(
        _make_mlp_kernel(n_layers),
        out_shape=jax.ShapeDtypeStruct((B_pad, dims_p[-1]), jnp.float32),
        grid_spec=pltpu.PrefetchScalarGridSpec(
            num_scalar_prefetch=0,
            grid=grid,
            in_specs=in_specs,
            out_specs=out_spec,
        ),
        compiler_params=pltpu.CompilerParams(
            dimension_semantics=("parallel",),
            vmem_limit_bytes=vmem_limit,
        ),
    )(x_p, *flat)

    return out_p[:B, :outputs]


def mlp_forward(x, prepared, *, tb=None):
    """x: [B, inputs]; prepared = prepare_params(params)."""
    flat, dims_p, outputs = prepared
    B = x.shape[0]
    n_layers = len(flat) // 2

    cap = _vmem_capacity_bytes()
    budget = min(cap // 2, 64 * 2**20)                 # tile-selection budget
    limit_cap = min(cap - 16 * 2**20, 100 * 2**20)     # scoped-VMEM ceiling
    max_tb = 1024 if cap >= 128 * 2**20 else 512

    weight_bytes = sum(
        dims_p[i] * dims_p[i + 1] * 2 + dims_p[i + 1] * 4   # single-buffered
        for i in range(n_layers))
    per_row_bytes = (dims_p[0] * 2 * 2       # bf16 x tile, double-buffered
                     + dims_p[-1] * 4 * 2    # f32 out tile, double-buffered
                     + max(dims_p) * 4 * 3)  # live f32/bf16 intermediates
    if tb is None:
        tb = _choose_tb(B, per_row_bytes, weight_bytes, budget, max_tb)
    # TODO(synk): add an output-feature (N) tiled fallback when the padded bf16
    # weights alone exceed ~48 MiB (v7x 64 MiB VMEM per TensorCore).

    vmem_limit = int(min(max(32 * 2**20,
                             1.5 * (weight_bytes + tb * per_row_bytes)),
                         limit_cap))
    return _mlp_forward_impl(x, flat, dims_p=dims_p, outputs=outputs,
                             tb=int(tb), vmem_limit=vmem_limit)


def init_params(key, inputs, outputs, n_layers, hidden):
    """Deterministic PyTorch-style init (uniform +/- 1/sqrt(fan_in)).

    Weights stored pre-transposed as [in_features, out_features]; biases as
    [1, out_features]."""
    dims = []
    for i in range(n_layers - 1):
        dims.append((inputs, hidden) if i == 0 else (hidden, hidden))
    dims.append((hidden if n_layers > 1 else inputs, outputs))

    params = []
    for (fan_in, fan_out) in dims:
        key, kw, kb = jax.random.split(key, 3)
        bound = 1.0 / jnp.sqrt(jnp.float32(fan_in))
        w = jax.random.uniform(kw, (fan_in, fan_out), jnp.float32, -bound, bound)
        b = jax.random.uniform(kb, (1, fan_out), jnp.float32, -bound, bound)
        params.append((w, b))
    return params


def mlp_ref(x, params):
    """Pure-JAX (f32) reference of the PyTorch forward."""
    h = x
    for (w, b) in params[:-1]:
        h = jnp.maximum(h @ w + b, 0.0)
    w, b = params[-1]
    return jax.nn.softmax(h @ w + b, axis=1)


if __name__ == "__main__":
    # Small shapes consistent with the module: batch=16, inputs=32, hidden=32,
    # outputs=16, n_layers=3.  Auto tile -> single 16-row grid step.
    B, INPUTS, OUTPUTS, N_LAYERS, HIDDEN = 16, 32, 16, 3, 32

    key = jax.random.PRNGKey(0)
    key, kx = jax.random.split(key)
    x = jax.random.normal(kx, (B, INPUTS), jnp.float32)

    params = init_params(key, INPUTS, OUTPUTS, N_LAYERS, HIDDEN)
    prepared = prepare_params(params)   # pad/cast weights once, outside hot path

    out = mlp_forward(x, prepared)
    out = jax.block_until_ready(out)

    ref = mlp_ref(x, params)
    assert out.shape == (B, OUTPUTS)
    # bf16 MXU matmuls -> relaxed tolerance vs the f32 reference.
    assert jnp.allclose(out, ref, atol=2e-2), "mismatch vs reference"
    # Exact in-kernel division: rows sum to 1 to f32 precision.
    assert jnp.allclose(jnp.sum(out, axis=1), 1.0, atol=1e-3), \
        "softmax rows must sum to 1"

    print("KERNEL_OK")
</pallas_src>

<mosaic_0001>
module attributes {stable_mosaic.version = 11 : i64} {
  func.func @kernel(%arg0: i32, %arg1: memref<16x128xbf16, #tpu.memory_space<vmem>>, %arg2: memref<128x128xbf16, #tpu.memory_space<vmem>>, %arg3: memref<1x128xf32, #tpu.memory_space<vmem>>, %arg4: memref<128x128xbf16, #tpu.memory_space<vmem>>, %arg5: memref<1x128xf32, #tpu.memory_space<vmem>>, %arg6: memref<128x128xbf16, #tpu.memory_space<vmem>>, %arg7: memref<1x128xf32, #tpu.memory_space<vmem>>, %arg8: memref<16x128xf32, #tpu.memory_space<vmem>>) attributes {dimension_semantics = [#tpu.dimension_semantics<parallel>], iteration_bounds = array<i64: 1>, scalar_prefetch = 0 : i64, scratch_operands = 0 : i64, tpu.core_type = #tpu.core_type<tc>, window_params = [{transform_indices = @transform_0, window_bounds = array<i64: 16, 128>}, {pipeline_mode = #tpu.pipeline_mode<synchronous>, transform_indices = @transform_1, window_bounds = array<i64: 128, 128>}, {pipeline_mode = #tpu.pipeline_mode<synchronous>, transform_indices = @transform_2, window_bounds = array<i64: 1, 128>}, {pipeline_mode = #tpu.pipeline_mode<synchronous>, transform_indices = @transform_3, window_bounds = array<i64: 128, 128>}, {pipeline_mode = #tpu.pipeline_mode<synchronous>, transform_indices = @transform_4, window_bounds = array<i64: 1, 128>}, {pipeline_mode = #tpu.pipeline_mode<synchronous>, transform_indices = @transform_5, window_bounds = array<i64: 128, 128>}, {pipeline_mode = #tpu.pipeline_mode<synchronous>, transform_indices = @transform_6, window_bounds = array<i64: 1, 128>}, {transform_indices = @transform_7, window_bounds = array<i64: 16, 128>}]} {
    %c0 = arith.constant 0 : index
    %c0_0 = arith.constant 0 : index
    %0 = vector.load %arg1[%c0, %c0_0] : memref<16x128xbf16, #tpu.memory_space<vmem>>, vector<16x128xbf16>
    %c0_1 = arith.constant 0 : index
    %c0_2 = arith.constant 0 : index
    %1 = vector.load %arg2[%c0_1, %c0_2] : memref<128x128xbf16, #tpu.memory_space<vmem>>, vector<128x128xbf16>
    %cst = arith.constant dense<0.000000e+00> : vector<16x128xf32>
    %2 = tpu.matmul %0, %1, %cst {dimension_numbers = #tpu.dot_dimension_numbers<[1], [0], [0], [1], [0, 0, 1, 1], [], []>} : vector<16x128xbf16>, vector<128x128xbf16>, vector<16x128xf32> -> vector<16x128xf32>
    %c0_3 = arith.constant 0 : index
    %c0_4 = arith.constant 0 : index
    %3 = vector.load %arg3[%c0_3, %c0_4] : memref<1x128xf32, #tpu.memory_space<vmem>>, vector<1x128xf32>
    %4 = vector.broadcast %3 : vector<1x128xf32> to vector<16x128xf32>
    %5 = arith.addf %2, %4 : vector<16x128xf32>
    %cst_5 = arith.constant 0.000000e+00 : f32
    %6 = vector.broadcast %cst_5 : f32 to vector<16x128xf32>
    %7 = arith.maximumf %5, %6 : vector<16x128xf32>
    %8 = arith.truncf %7 : vector<16x128xf32> to vector<16x128xbf16>
    %c0_6 = arith.constant 0 : index
    %c0_7 = arith.constant 0 : index
    %9 = vector.load %arg4[%c0_6, %c0_7] : memref<128x128xbf16, #tpu.memory_space<vmem>>, vector<128x128xbf16>
    %cst_8 = arith.constant dense<0.000000e+00> : vector<16x128xf32>
    %10 = tpu.matmul %8, %9, %cst_8 {dimension_numbers = #tpu.dot_dimension_numbers<[1], [0], [0], [1], [0, 0, 1, 1], [], []>} : vector<16x128xbf16>, vector<128x128xbf16>, vector<16x128xf32> -> vector<16x128xf32>
    %c0_9 = arith.constant 0 : index
    %c0_10 = arith.constant 0 : index
    %11 = vector.load %arg5[%c0_9, %c0_10] : memref<1x128xf32, #tpu.memory_space<vmem>>, vector<1x128xf32>
    %12 = vector.broadcast %11 : vector<1x128xf32> to vector<16x128xf32>
    %13 = arith.addf %10, %12 : vector<16x128xf32>
    %cst_11 = arith.constant 0.000000e+00 : f32
    %14 = vector.broadcast %cst_11 : f32 to vector<16x128xf32>
    %15 = arith.maximumf %13, %14 : vector<16x128xf32>
    %16 = arith.truncf %15 : vector<16x128xf32> to vector<16x128xbf16>
    %c0_12 = arith.constant 0 : index
    %c0_13 = arith.constant 0 : index
    %17 = vector.load %arg6[%c0_12, %c0_13] : memref<128x128xbf16, #tpu.memory_space<vmem>>, vector<128x128xbf16>
    %cst_14 = arith.constant dense<0.000000e+00> : vector<16x128xf32>
    %18 = tpu.matmul %16, %17, %cst_14 {dimension_numbers = #tpu.dot_dimension_numbers<[1], [0], [0], [1], [0, 0, 1, 1], [], []>} : vector<16x128xbf16>, vector<128x128xbf16>, vector<16x128xf32> -> vector<16x128xf32>
    %c0_15 = arith.constant 0 : index
    %c0_16 = arith.constant 0 : index
    %19 = vector.load %arg7[%c0_15, %c0_16] : memref<1x128xf32, #tpu.memory_space<vmem>>, vector<1x128xf32>
    %20 = vector.broadcast %19 : vector<1x128xf32> to vector<16x128xf32>
    %21 = arith.addf %18, %20 : vector<16x128xf32>
    %cst_17 = arith.constant dense<0xFF800000> : vector<16xf32>
    %22 = vector.multi_reduction <maximumf>, %21, %cst_17 [1] : vector<16x128xf32> to vector<16xf32>
    %23 = vector.shape_cast %22 : vector<16xf32> to vector<16x1xf32>
    %24 = vector.broadcast %23 : vector<16x1xf32> to vector<16x128xf32>
    %25 = arith.subf %21, %24 : vector<16x128xf32>
    %26 = math.exp %25 : vector<16x128xf32>
    %cst_18 = arith.constant dense<0.000000e+00> : vector<16xf32>
    %27 = vector.multi_reduction <add>, %26, %cst_18 [1] : vector<16x128xf32> to vector<16xf32>
    %28 = vector.shape_cast %27 : vector<16xf32> to vector<16x1xf32>
    %29 = vector.broadcast %28 : vector<16x1xf32> to vector<16x128xf32>
    %30 = arith.divf %26, %29 : vector<16x128xf32>
    %c0_19 = arith.constant 0 : index
    %c0_20 = arith.constant 0 : index
    %31 = vector.load %arg8[%c0_19, %c0_20] : memref<16x128xf32, #tpu.memory_space<vmem>>, vector<16x128xf32>
    tpu.vector_store %arg8[%c0_19, %c0_20], %30 {strides = array<i32>} : memref<16x128xf32, #tpu.memory_space<vmem>>, vector<16x128xf32>,
    return
  }
  func.func @transform_0(%arg0: i32) -> (i32, i32) {
    %c0_i32 = arith.constant 0 : i32
    %c0_i32_0 = arith.constant 0 : i32
    return %arg0, %c0_i32 : i32, i32
  }
  func.func @transform_1(%arg0: i32) -> (i32, i32) {
    %c0_i32 = arith.constant 0 : i32
    %c0_i32_0 = arith.constant 0 : i32
    %c0_i32_1 = arith.constant 0 : i32
    return %c0_i32, %c0_i32_0 : i32, i32
  }
  func.func @transform_2(%arg0: i32) -> (i32, i32) {
    %c0_i32 = arith.constant 0 : i32
    %c0_i32_0 = arith.constant 0 : i32
    %c0_i32_1 = arith.constant 0 : i32
    return %c0_i32, %c0_i32_0 : i32, i32
  }
  func.func @transform_3(%arg0: i32) -> (i32, i32) {
    %c0_i32 = arith.constant 0 : i32
    %c0_i32_0 = arith.constant 0 : i32
    %c0_i32_1 = arith.constant 0 : i32
    return %c0_i32, %c0_i32_0 : i32, i32
  }
  func.func @transform_4(%arg0: i32) -> (i32, i32) {
    %c0_i32 = arith.constant 0 : i32
    %c0_i32_0 = arith.constant 0 : i32
    %c0_i32_1 = arith.constant 0 : i32
    return %c0_i32, %c0_i32_0 : i32, i32
  }
  func.func @transform_5(%arg0: i32) -> (i32, i32) {
    %c0_i32 = arith.constant 0 : i32
    %c0_i32_0 = arith.constant 0 : i32
    %c0_i32_1 = arith.constant 0 : i32
    return %c0_i32, %c0_i32_0 : i32, i32
  }
  func.func @transform_6(%arg0: i32) -> (i32, i32) {
    %c0_i32 = arith.constant 0 : i32
    %c0_i32_0 = arith.constant 0 : i32
    %c0_i32_1 = arith.constant 0 : i32
    return %c0_i32, %c0_i32_0 : i32, i32
  }
  func.func @transform_7(%arg0: i32) -> (i32, i32) {
    %c0_i32 = arith.constant 0 : i32
    %c0_i32_0 = arith.constant 0 : i32
    return %arg0, %c0_i32 : i32, i32
  }
}

</mosaic_0001>

<llo_original>
// kernel: _mlp_forward_impl.1
$region0: #{_mlp_forward_impl.1}
  #allocation0 [shape = 'u32[]', space=smem, size = 0x4, offset = 0x4, fixed_abs, tag = 'smem constant byte address 0x4 - core index']
  #allocation1 [shape = 'u32[144,128]{1,0:T(1,128)}', space=vmem, size = 0x12000, scoped, tag = 'internal scratch']
  %s0 = inlined_call_operand.vmem [shape: bf16[16,128], index: 0, kind: input, shape index: {}]
  %s1 = inlined_call_operand.hbm [shape: bf16[128,128], index: 1, kind: input, shape index: {}]
  %s2 = inlined_call_operand.vmem [shape: f32[1,128], index: 2, kind: input, shape index: {}]
  %s3 = inlined_call_operand.hbm [shape: bf16[128,128], index: 3, kind: input, shape index: {}]
  %s4 = inlined_call_operand.vmem [shape: f32[1,128], index: 4, kind: input, shape index: {}]
  %s5 = inlined_call_operand.hbm [shape: bf16[128,128], index: 5, kind: input, shape index: {}]
  %s6 = inlined_call_operand.vmem [shape: f32[1,128], index: 6, kind: input, shape index: {}]
  %s7 = inlined_call_operand.hbm [shape: f32[16,128], index: 7, kind: output, shape index: {}]
  %s8 = sld [smem:[#allocation0]]
  $region50: #{_mlp_forward_impl.1} parent=0
    _
  %s10 = ssub.s32 1, %s8
  %s11 = scalar_select 0, %s10, %s8
  $region1: #{_mlp_forward_impl.1} parent=0
    #allocation2 [shape = 'u8[32768]{0}', space=vmem, size = 0x8000, scoped, tag = 'input window, operand 1, single buffered']
    #allocation3 [shape = 's32[1]{0}', space=sflag, size = 0x4, scoped, tag = 'scoped memory for _mlp_forward_impl.1']
    #allocation4 [shape = 's32[1]{0}', space=sflag, size = 0x4, scoped, tag = 'scoped memory for _mlp_forward_impl.1']
    #allocation5 [shape = 'u8[32768]{0}', space=vmem, size = 0x8000, scoped, tag = 'input window, operand 3, single buffered']
    #allocation6 [shape = 's32[1]{0}', space=sflag, size = 0x4, scoped, tag = 'scoped memory for _mlp_forward_impl.1']
    #allocation7 [shape = 'u8[32768]{0}', space=vmem, size = 0x8000, scoped, tag = 'input window, operand 5, single buffered']
    #allocation8 [shape = 'u8[8192]{0}', space=vmem, size = 0x2000, scoped, tag = 'output window, operand 0, single buffered']
    %12 = vsyncpa [#allocation3], 0
    %13 = vsyncpa [#allocation6], 0
    %14 = vsyncpa [#allocation4], 0
    // Predicated region
    $region2: #{_mlp_forward_impl.1} parent=1 // pred_check
      _
    $region3: #{_mlp_forward_impl.1} parent=1 // pred_check_branch
      %16 = sbr.rel (0) target = $region5
    $region4: #{_mlp_forward_impl.1} parent=1 // pred_region
      _
    $region5: #{_mlp_forward_impl.1} parent=1 // pred_fallthru
      _
    // Predicated region
    $region6: #{_mlp_forward_impl.1} parent=1 // pred_check
      _
    $region7: #{_mlp_forward_impl.1} parent=1 // pred_check_branch
      %18 = sbr.rel (0) target = $region9
    $region8: #{_mlp_forward_impl.1} parent=1 // pred_region
      %s20 = ssub.s32 1024, 1024
      %21 = vsyncadd [#allocation3], %s20
      %s22 = sshll.u32 [#allocation2], 4
      %s23 = int_to_ptr.vmem [resolvable:$true] %s22
      %28 = dma.hbm_to_vmem [thread:$0]  %s1, 1024, %s23, [#allocation3], 64, 64, 4
    $region9: #{_mlp_forward_impl.1} parent=1 // pred_fallthru
      _
    // Predicated region
    $region10: #{_mlp_forward_impl.1} parent=1 // pred_check
      _
    $region11: #{_mlp_forward_impl.1} parent=1 // pred_check_branch
      %30 = sbr.rel (0) target = $region13
    $region12: #{_mlp_forward_impl.1} parent=1 // pred_region
      _
    $region13: #{_mlp_forward_impl.1} parent=1 // pred_fallthru
      _
    // Predicated region
    $region14: #{_mlp_forward_impl.1} parent=1 // pred_check
      _
    $region15: #{_mlp_forward_impl.1} parent=1 // pred_check_branch
      %32 = sbr.rel (0) target = $region17
    $region16: #{_mlp_forward_impl.1} parent=1 // pred_region
      %s34 = ssub.s32 1024, 1024
      %35 = vsyncadd [#allocation6], %s34
      %s36 = sshll.u32 [#allocation5], 4
      %s37 = int_to_ptr.vmem [resolvable:$true] %s36
      %42 = dma.hbm_to_vmem [thread:$0]  %s3, 1024, %s37, [#allocation6], 64, 64, 4
    $region17: #{_mlp_forward_impl.1} parent=1 // pred_fallthru
      _
    // Predicated region
    $region18: #{_mlp_forward_impl.1} parent=1 // pred_check
      _
    $region19: #{_mlp_forward_impl.1} parent=1 // pred_check_branch
      %44 = sbr.rel (0) target = $region21
    $region20: #{_mlp_forward_impl.1} parent=1 // pred_region
      _
    $region21: #{_mlp_forward_impl.1} parent=1 // pred_fallthru
      _
    // Predicated region
    $region22: #{_mlp_forward_impl.1} parent=1 // pred_check
      _
    $region23: #{_mlp_forward_impl.1} parent=1 // pred_check_branch
      %46 = sbr.rel (0) target = $region25
    $region24: #{_mlp_forward_impl.1} parent=1 // pred_region
      %s48 = ssub.s32 1024, 1024
      %49 = vsyncadd [#allocation6], %s48
      %s50 = sshll.u32 [#allocation7], 4
      %s51 = int_to_ptr.vmem [resolvable:$true] %s50
      %56 = dma.hbm_to_vmem [thread:$0]  %s5, 1024, %s51, [#allocation6], 64, 64, 4
    $region25: #{_mlp_forward_impl.1} parent=1 // pred_fallthru
      _
    // Predicated region
    $region26: #{_mlp_forward_impl.1} parent=1 // pred_check
      _
    $region27: #{_mlp_forward_impl.1} parent=1 // pred_check_branch
      %58 = sbr.rel (0) target = $region29
    $region28: #{_mlp_forward_impl.1} parent=1 // pred_region
      _
    $region29: #{_mlp_forward_impl.1} parent=1 // pred_fallthru
      _
    // Predicated region
    $region30: #{_mlp_forward_impl.1} parent=1 // pred_check
      _
    $region31: #{_mlp_forward_impl.1} parent=1 // pred_check_branch
      %60 = sbr.rel (0) target = $region33
    $region32: #{_mlp_forward_impl.1} parent=1 // pred_region
      %61 = dma.done [#allocation3], 1024
    $region33: #{_mlp_forward_impl.1} parent=1 // pred_fallthru
      _
    // Predicated region
    $region34: #{_mlp_forward_impl.1} parent=1 // pred_check
      _
    $region35: #{_mlp_forward_impl.1} parent=1 // pred_check_branch
      %63 = sbr.rel (0) target = $region37
    $region36: #{_mlp_forward_impl.1} parent=1 // pred_region
      %64 = dma.done [#allocation6], 1024
    $region37: #{_mlp_forward_impl.1} parent=1 // pred_fallthru
      _
    // Predicated region
    $region38: #{_mlp_forward_impl.1} parent=1 // pred_check
      _
    $region39: #{_mlp_forward_impl.1} parent=1 // pred_check_branch
      %66 = sbr.rel (0) target = $region41
    $region40: #{_mlp_forward_impl.1} parent=1 // pred_region
      %67 = dma.done [#allocation6], 1024
    $region41: #{_mlp_forward_impl.1} parent=1 // pred_fallthru
      _
    %v69 = vld [vmem:[%s0] sm:$0xf]
    %v70 = vld [vmem:[%s0 + $0x4] sm:$0xf]
    %v71 = vld [vmem:[#allocation2] sm:$0xf]
    %v72 = vld [vmem:[#allocation2 + $0x4] sm:$0xf]
    %v73 = vld [vmem:[#allocation2 + $0x8] sm:$0xf]
    %v74 = vld [vmem:[#allocation2 + $0xc] sm:$0xf]
    %v75 = vld [vmem:[#allocation2 + $0x10] sm:$0xf]
    %v76 = vld [vmem:[#allocation2 + $0x14] sm:$0xf]
    %v77 = vld [vmem:[#allocation2 + $0x18] sm:$0xf]
    %v78 = vld [vmem:[#allocation2 + $0x1c] sm:$0xf]
    %v79 = vld [vmem:[#allocation2 + $0x20] sm:$0xf]
    %v80 = vld [vmem:[#allocation2 + $0x24] sm:$0xf]
    %v81 = vld [vmem:[#allocation2 + $0x28] sm:$0xf]
    %v82 = vld [vmem:[#allocation2 + $0x2c] sm:$0xf]
    %v83 = vld [vmem:[#allocation2 + $0x30] sm:$0xf]
    %v84 = vld [vmem:[#allocation2 + $0x34] sm:$0xf]
    %v85 = vld [vmem:[#allocation2 + $0x38] sm:$0xf]
    %v86 = vld [vmem:[#allocation2 + $0x3c] sm:$0xf]
    %v87 = vld [vmem:[%s2] sm:$0x1]
    %v89 = vlaneseq
    %v90 = vshrl.u32 %v89, 7
    %v91 = vsub.s32 0, %v90
    %v92 = vrot.slane %v87, %v91
    %v96 = vunpack.c.l.b16 %v69
    %v97 = vunpack.c.l.b16 %v70
    %v98 = vpack.c.b16 %v97, %v96
    %v116 = vunpack.c.l.b16 %v71
    %v117 = vunpack.c.l.b16 %v72
    %v118 = vunpack.c.l.b16 %v73
    %v119 = vunpack.c.l.b16 %v74
    %v120 = vunpack.c.l.b16 %v75
    %v121 = vunpack.c.l.b16 %v76
    %v122 = vunpack.c.l.b16 %v77
    %v123 = vunpack.c.l.b16 %v78
    %v124 = vunpack.c.l.b16 %v79
    %v125 = vunpack.c.l.b16 %v80
    %v126 = vunpack.c.l.b16 %v81
    %v127 = vunpack.c.l.b16 %v82
    %v128 = vunpack.c.l.b16 %v83
    %v129 = vunpack.c.l.b16 %v84
    %v130 = vunpack.c.l.b16 %v85
    %v131 = vunpack.c.l.b16 %v86
    %v132 = vpack.c.b16 %v117, %v116
    %v133 = vpack.c.b16 %v119, %v118
    %v134 = vpack.c.b16 %v121, %v120
    %v135 = vpack.c.b16 %v123, %v122
    %v136 = vpack.c.b16 %v125, %v124
    %v137 = vpack.c.b16 %v127, %v126
    %v138 = vpack.c.b16 %v129, %v128
    %v139 = vpack.c.b16 %v131, %v130
    %148 = vmatprep.subr.bf16.mxu0 0
    %149 = vmatpush1.bf16.msra.mxu0 %v139
    %150 = vmatprep.subr.bf16.mxu0 0
    %151 = vmatpush1.bf16.msra.mxu0 %v138
    %152 = vmatprep.subr.bf16.mxu0 0
    %153 = vmatpush1.bf16.msra.mxu0 %v137
    %154 = vmatprep.subr.bf16.mxu0 0
    %155 = vmatpush1.bf16.msra.mxu0 %v136
    %156 = vmatprep.subr.bf16.mxu0 0
    %157 = vmatpush1.bf16.msra.mxu0 %v135
    %158 = vmatprep.subr.bf16.mxu0 0
    %159 = vmatpush1.bf16.msra.mxu0 %v134
    %160 = vmatprep.subr.bf16.mxu0 0
    %161 = vmatpush1.bf16.msra.mxu0 %v133
    %162 = vmatprep.subr.bf16.mxu0 0
    %163 = vmatpush1.bf16.msra.mxu0 %v132
    %164 = vmatprep.subr.bf16.mxu0 0
    %165 = vmatpush2.bf16.msra.mxu0 0
    %166 = vmatprep.subr.bf16.mxu0 0
    %167 = vmatpush2.bf16.msra.mxu0 0
    %168 = vmatprep.subr.bf16.mxu0 0
    %169 = vmatpush2.bf16.msra.mxu0 0
    %170 = vmatprep.subr.bf16.mxu0 0
    %171 = vmatpush2.bf16.msra.mxu0 0
    %172 = vmatprep.subr.bf16.mxu0 0
    %173 = vmatpush2.bf16.msra.mxu0 0
    %174 = vmatprep.subr.bf16.mxu0 0
    %175 = vmatpush2.bf16.msra.mxu0 0
    %176 = vmatprep.subr.bf16.mxu0 0
    %177 = vmatpush2.bf16.msra.mxu0 0
    %178 = vmatprep.subr.bf16.mxu0 0
    %179 = vmatpush2.bf16.msra.mxu0 0
    %180 = vmatprep.mubr.bf16.mxu0 0
    %181 = vmatmul.mubr.bf16.gmra.mxu0 %v98
    %v182 = vpop.f32.mrf.mxu0
    %v183 = vadd.f32 %v92, %v182
    %v184 = vpop.f32.mrf.mxu0
    %v185 = vpop.f32.mrf.mxu0
    %v186 = vadd.f32 %v92, %v185
    %v187 = vpop.f32.mrf.mxu0
    %188 = vdwg.mxu0
    %v189 = vmax.f32 %v183, 0.0
    %v190 = vmax.f32 %v186, 0.0
    %v191 = vpack.c.bf16 %v190, %v189
    %v192 = vld [vmem:[#allocation5] sm:$0xf]
    %v193 = vld [vmem:[#allocation5 + $0x4] sm:$0xf]
    %v194 = vld [vmem:[#allocation5 + $0x8] sm:$0xf]
    %v195 = vld [vmem:[#allocation5 + $0xc] sm:$0xf]
    %v196 = vld [vmem:[#allocation5 + $0x10] sm:$0xf]
    %v197 = vld [vmem:[#allocation5 + $0x14] sm:$0xf]
    %v198 = vld [vmem:[#allocation5 + $0x18] sm:$0xf]
    %v199 = vld [vmem:[#allocation5 + $0x1c] sm:$0xf]
    %v200 = vld [vmem:[#allocation5 + $0x20] sm:$0xf]
    %v201 = vld [vmem:[#allocation5 + $0x24] sm:$0xf]
    %v202 = vld [vmem:[#allocation5 + $0x28] sm:$0xf]
    %v203 = vld [vmem:[#allocation5 + $0x2c] sm:$0xf]
    %v204 = vld [vmem:[#allocation5 + $0x30] sm:$0xf]
    %v205 = vld [vmem:[#allocation5 + $0x34] sm:$0xf]
    %v206 = vld [vmem:[#allocation5 + $0x38] sm:$0xf]
    %v207 = vld [vmem:[#allocation5 + $0x3c] sm:$0xf]
    %v208 = vld [vmem:[%s4] sm:$0x1]
    %v210 = vlaneseq
    %v211 = vshrl.u32 %v210, 7
    %v212 = vsub.s32 0, %v211
    %v213 = vrot.slane %v208, %v212
    %v231 = vunpack.c.l.b16 %v192
    %v232 = vunpack.c.l.b16 %v193
    %v233 = vunpack.c.l.b16 %v194
    %v234 = vunpack.c.l.b16 %v195
    %v235 = vunpack.c.l.b16 %v196
    %v236 = vunpack.c.l.b16 %v197
    %v237 = vunpack.c.l.b16 %v198
    %v238 = vunpack.c.l.b16 %v199
    %v239 = vunpack.c.l.b16 %v200
    %v240 = vunpack.c.l.b16 %v201
    %v241 = vunpack.c.l.b16 %v202
    %v242 = vunpack.c.l.b16 %v203
    %v243 = vunpack.c.l.b16 %v204
    %v244 = vunpack.c.l.b16 %v205
    %v245 = vunpack.c.l.b16 %v206
    %v246 = vunpack.c.l.b16 %v207
    %v247 = vpack.c.b16 %v232, %v231
    %v248 = vpack.c.b16 %v234, %v233
    %v249 = vpack.c.b16 %v236, %v235
    %v250 = vpack.c.b16 %v238, %v237
    %v251 = vpack.c.b16 %v240, %v239
    %v252 = vpack.c.b16 %v242, %v241
    %v253 = vpack.c.b16 %v244, %v243
    %v254 = vpack.c.b16 %v246, %v245
    %263 = vmatprep.subr.bf16.mxu0 0
    %264 = vmatpush1.bf16.msra.mxu0 %v254
    %265 = vmatprep.subr.bf16.mxu0 0
    %266 = vmatpush1.bf16.msra.mxu0 %v253
    %267 = vmatprep.subr.bf16.mxu0 0
    %268 = vmatpush1.bf16.msra.mxu0 %v252
    %269 = vmatprep.subr.bf16.mxu0 0
    %270 = vmatpush1.bf16.msra.mxu0 %v251
    %271 = vmatprep.subr.bf16.mxu0 0
    %272 = vmatpush1.bf16.msra.mxu0 %v250
    %273 = vmatprep.subr.bf16.mxu0 0
    %274 = vmatpush1.bf16.msra.mxu0 %v249
    %275 = vmatprep.subr.bf16.mxu0 0
    %276 = vmatpush1.bf16.msra.mxu0 %v248
    %277 = vmatprep.subr.bf16.mxu0 0
    %278 = vmatpush1.bf16.msra.mxu0 %v247
    %279 = vmatprep.subr.bf16.mxu0 0
    %280 = vmatpush2.bf16.msra.mxu0 0
    %281 = vmatprep.subr.bf16.mxu0 0
    %282 = vmatpush2.bf16.msra.mxu0 0
    %283 = vmatprep.subr.bf16.mxu0 0
    %284 = vmatpush2.bf16.msra.mxu0 0
    %285 = vmatprep.subr.bf16.mxu0 0
    %286 = vmatpush2.bf16.msra.mxu0 0
    %287 = vmatprep.subr.bf16.mxu0 0
    %288 = vmatpush2.bf16.msra.mxu0 0
    %289 = vmatprep.subr.bf16.mxu0 0
    %290 = vmatpush2.bf16.msra.mxu0 0
    %291 = vmatprep.subr.bf16.mxu0 0
    %292 = vmatpush2.bf16.msra.mxu0 0
    %293 = vmatprep.subr.bf16.mxu0 0
    %294 = vmatpush2.bf16.msra.mxu0 0
    %295 = vmatprep.mubr.bf16.mxu0 0
    %296 = vmatmul.mubr.bf16.gmra.mxu0 %v191
    %v297 = vpop.f32.mrf.mxu0
    %v298 = vadd.f32 %v213, %v297
    %v299 = vpop.f32.mrf.mxu0
    %v300 = vpop.f32.mrf.mxu0
    %v301 = vadd.f32 %v213, %v300
    %v302 = vpop.f32.mrf.mxu0
    %303 = vdwg.mxu0
    %v304 = vmax.f32 %v298, 0.0
    %v305 = vmax.f32 %v301, 0.0
    %v306 = vpack.c.bf16 %v305, %v304
    %v307 = vld [vmem:[#allocation7] sm:$0xf]
    %v308 = vld [vmem:[#allocation7 + $0x4] sm:$0xf]
    %v309 = vld [vmem:[#allocation7 + $0x8] sm:$0xf]
    %v310 = vld [vmem:[#allocation7 + $0xc] sm:$0xf]
    %v311 = vld [vmem:[#allocation7 + $0x10] sm:$0xf]
    %v312 = vld [vmem:[#allocation7 + $0x14] sm:$0xf]
    %v313 = vld [vmem:[#allocation7 + $0x18] sm:$0xf]
    %v314 = vld [vmem:[#allocation7 + $0x1c] sm:$0xf]
    %v315 = vld [vmem:[#allocation7 + $0x20] sm:$0xf]
    %v316 = vld [vmem:[#allocation7 + $0x24] sm:$0xf]
    %v317 = vld [vmem:[#allocation7 + $0x28] sm:$0xf]
    %v318 = vld [vmem:[#allocation7 + $0x2c] sm:$0xf]
    %v319 = vld [vmem:[#allocation7 + $0x30] sm:$0xf]
    %v320 = vld [vmem:[#allocation7 + $0x34] sm:$0xf]
    %v321 = vld [vmem:[#allocation7 + $0x38] sm:$0xf]
    %v322 = vld [vmem:[#allocation7 + $0x3c] sm:$0xf]
    %v323 = vld [vmem:[%s6] sm:$0x1]
    %v325 = vlaneseq
    %v326 = vshrl.u32 %v325, 7
    %v327 = vsub.s32 0, %v326
    %v328 = vrot.slane %v323, %v327
    %v346 = vunpack.c.l.b16 %v307
    %v347 = vunpack.c.l.b16 %v308
    %v348 = vunpack.c.l.b16 %v309
    %v349 = vunpack.c.l.b16 %v310
    %v350 = vunpack.c.l.b16 %v311
    %v351 = vunpack.c.l.b16 %v312
    %v352 = vunpack.c.l.b16 %v313
    %v353 = vunpack.c.l.b16 %v314
    %v354 = vunpack.c.l.b16 %v315
    %v355 = vunpack.c.l.b16 %v316
    %v356 = vunpack.c.l.b16 %v317
    %v357 = vunpack.c.l.b16 %v318
    %v358 = vunpack.c.l.b16 %v319
    %v359 = vunpack.c.l.b16 %v320
    %v360 = vunpack.c.l.b16 %v321
    %v361 = vunpack.c.l.b16 %v322
    %v362 = vpack.c.b16 %v347, %v346
    %v363 = vpack.c.b16 %v349, %v348
    %v364 = vpack.c.b16 %v351, %v350
    %v365 = vpack.c.b16 %v353, %v352
    %v366 = vpack.c.b16 %v355, %v354
    %v367 = vpack.c.b16 %v357, %v356
    %v368 = vpack.c.b16 %v359, %v358
    %v369 = vpack.c.b16 %v361, %v360
    %378 = vmatprep.subr.bf16.mxu0 0
    %379 = vmatpush1.bf16.msra.mxu0 %v369
    %380 = vmatprep.subr.bf16.mxu0 0
    %381 = vmatpush1.bf16.msra.mxu0 %v368
    %382 = vmatprep.subr.bf16.mxu0 0
    %383 = vmatpush1.bf16.msra.mxu0 %v367
    %384 = vmatprep.subr.bf16.mxu0 0
    %385 = vmatpush1.bf16.msra.mxu0 %v366
    %386 = vmatprep.subr.bf16.mxu0 0
    %387 = vmatpush1.bf16.msra.mxu0 %v365
    %388 = vmatprep.subr.bf16.mxu0 0
    %389 = vmatpush1.bf16.msra.mxu0 %v364
    %390 = vmatprep.subr.bf16.mxu0 0
    %391 = vmatpush1.bf16.msra.mxu0 %v363
    %392 = vmatprep.subr.bf16.mxu0 0
    %393 = vmatpush1.bf16.msra.mxu0 %v362
    %394 = vmatprep.subr.bf16.mxu0 0
    %395 = vmatpush2.bf16.msra.mxu0 0
    %396 = vmatprep.subr.bf16.mxu0 0
    %397 = vmatpush2.bf16.msra.mxu0 0
    %398 = vmatprep.subr.bf16.mxu0 0
    %399 = vmatpush2.bf16.msra.mxu0 0
    %400 = vmatprep.subr.bf16.mxu0 0
    %401 = vmatpush2.bf16.msra.mxu0 0
    %402 = vmatprep.subr.bf16.mxu0 0
    %403 = vmatpush2.bf16.msra.mxu0 0
    %404 = vmatprep.subr.bf16.mxu0 0
    %405 = vmatpush2.bf16.msra.mxu0 0
    %406 = vmatprep.subr.bf16.mxu0 0
    %407 = vmatpush2.bf16.msra.mxu0 0
    %408 = vmatprep.subr.bf16.mxu0 0
    %409 = vmatpush2.bf16.msra.mxu0 0
    %410 = vmatprep.mubr.bf16.mxu0 0
    %411 = vmatmul.mubr.bf16.gmra.mxu0 %v306
    %v412 = vpop.f32.mrf.mxu0
    %v413 = vadd.f32 %v328, %v412
    %v414 = vpop.f32.mrf.mxu0
    %v415 = vpop.f32.mrf.mxu0
    %v416 = vadd.f32 %v328, %v415
    %v417 = vpop.f32.mrf.mxu0
    %418 = vdwg.mxu0
    %419 = vmax.xlane.f32.xlu0 %v413
    %v420 = vpop.xlane.xlu0 %419
    %421 = vmax.xlane.f32.xlu0 %v416
    %v422 = vpop.xlane.xlu0 %421
    %v423 = vsub.f32 %v413, %v420
    %v424 = vsub.f32 %v416, %v422
    %v425 = vmul.f32 %v423, 1.442695
    %v426 = vpow.pop %v425
    %v427 = vmul.f32 %v424, 1.442695
    %v428 = vpow.pop %v427
    %429 = vadd.xlane.f32.xlu0 %v426
    %v430 = vpop.xlane.xlu0 %429
    %431 = vadd.xlane.f32.xlu0 %v428
    %v432 = vpop.xlane.xlu0 %431
    %v433 = vrcp.pop %v430
    %v434 = vmul.f32 %v426, %v433
    %v435 = vrcp.pop %v432
    %v436 = vmul.f32 %v428, %v435
    %437 = vst [vmem:[#allocation8] sm:$0xff] %v434
    %438 = vst [vmem:[#allocation8 + $0x8] sm:$0xff] %v436
    // Predicated region
    $region42: #{_mlp_forward_impl.1} parent=1 // pred_check
      _
    $region43: #{_mlp_forward_impl.1} parent=1 // pred_check_branch
      %440 = sbr.rel (0) target = $region45
    $region44: #{_mlp_forward_impl.1} parent=1 // pred_region
      %s442 = ssub.s32 256, 256
      %443 = vsyncadd [#allocation4], %s442
      %s444 = sshll.u32 [#allocation8], 4
      %s445 = int_to_ptr.vmem [resolvable:$true] %s444
      %450 = dma.vmem_to_hbm [thread:$0]  %s445, 256, %s7, [#allocation4], 128, 128, 8
    $region45: #{_mlp_forward_impl.1} parent=1 // pred_fallthru
      _
    // Predicated region
    $region46: #{_mlp_forward_impl.1} parent=1 // pred_check
      _
    $region47: #{_mlp_forward_impl.1} parent=1 // pred_check_branch
      %452 = sbr.rel (0) target = $region49
    $region48: #{_mlp_forward_impl.1} parent=1 // pred_region
      %453 = dma.done [#allocation4], 256
    $region49: #{_mlp_forward_impl.1} parent=1 // pred_fallthru
      _
    %454 = vsyncpa [#allocation3], 1
    %455 = vsyncpa [#allocation6], 1
    %456 = vsyncpa [#allocation4], 1

</llo_original>
